<compile_context>
chip_gen: v7x
topology: tpu7x:2x2x1
jax: 0.10.0
libtpu: 0.0.40
codegen_flags: <defaults>
</compile_context>

<pallas_src>
import numpy as np
import jax
import jax.numpy as jnp
from jax.experimental import pallas as pl
from jax.experimental.pallas import tpu as pltpu

L = 6          # spatial length of the strain signal
C1 = 8         # conv1 out channels
C2 = 16        # conv3 out channels
H = 16         # fc1 hidden
OUT = 6        # fc2 out
TB = 256       # batch tile in lanes (multiple of 128; sweep {128, 256, 512})


# ----------------------------------------------------------------------------
# Pallas kernel: whole forward pass for one batch tile, batch-in-lanes.
# Biases are folded into the weights: the input carries a constant-1 feature
# row, and W1/W2/W3 carry a [0,...,0,1] last row that propagates it (ReLU
# leaves the ones row untouched since 1 > 0).
# ----------------------------------------------------------------------------
def strain_cnn_kernel(x_ref, w1_ref, w2_ref, w3_ref, w4_ref, o_ref):
    # conv1 (Toeplitz) + bias + ReLU                      (49, TB)
    h = jnp.maximum(jnp.dot(w1_ref[...], x_ref[...],
                            preferred_element_type=jnp.float32), 0.0)
    # conv3 (Toeplitz) + bias + ReLU                      (97, TB)
    h = jnp.maximum(jnp.dot(w2_ref[...], h,
                            preferred_element_type=jnp.float32), 0.0)
    # fc1 + bias + ReLU                                   (17, TB)
    h = jnp.maximum(jnp.dot(w3_ref[...], h,
                            preferred_element_type=jnp.float32), 0.0)
    # fc2 + bias                                          (6, TB)
    o_ref[...] = jnp.dot(w4_ref[...], h,
                         preferred_element_type=jnp.float32).astype(o_ref.dtype)


# ----------------------------------------------------------------------------
# One-time weight preparation (host-side numpy; not in the per-call path).
# ----------------------------------------------------------------------------
def conv1d_to_dense(w, b, length):
    """Conv1d(k=3, pad=1, stride=1) -> dense (cout*L, cin*L) matrix + bias,
    matching PyTorch's channel-major flatten order (c*L + l)."""
    w = np.asarray(w, np.float32)
    b = np.asarray(b, np.float32)
    cout, cin, k = w.shape
    Wd = np.zeros((cout * length, cin * length), np.float32)
    for co in range(cout):
        for ci in range(cin):
            for l in range(length):
                for kk in range(k):
                    i = l + kk - 1           # padding = 1
                    if 0 <= i < length:
                        Wd[co * length + l, ci * length + i] = w[co, ci, kk]
    bd = np.repeat(b, length)
    return Wd, bd


def _augment(Wd, bd, keep_ones_row):
    """[Wd | bd]; optionally append a [0,...,0,1] row to propagate the ones lane."""
    rows = np.concatenate([np.asarray(Wd, np.float32),
                           np.asarray(bd, np.float32)[:, None]], axis=1)
    if keep_ones_row:
        ones_row = np.zeros((1, rows.shape[1]), np.float32)
        ones_row[0, -1] = 1.0
        rows = np.concatenate([rows, ones_row], axis=0)
    return rows


def prepare_weights(params):
    (w_conv1, b_conv1, w_conv3, b_conv3,
     w_fc1, b_fc1, w_fc2, b_fc2) = [np.asarray(p, np.float32) for p in params]
    T1, bd1 = conv1d_to_dense(w_conv1, b_conv1, L)     # (48, 6), (48,)
    T2, bd2 = conv1d_to_dense(w_conv3, b_conv3, L)     # (96, 48), (96,)
    W1 = _augment(T1, bd1, True)                       # (49, 7)
    W2 = _augment(T2, bd2, True)                       # (97, 49)
    W3 = _augment(w_fc1, b_fc1, True)                  # (17, 97)
    W4 = _augment(w_fc2, b_fc2, False)                 # (6, 17)
    return tuple(jnp.asarray(w) for w in (W1, W2, W3, W4))


# ----------------------------------------------------------------------------
# Forward wrapper (jitted): pad batch to a TB multiple, batch-in-lanes.
# ----------------------------------------------------------------------------
@jax.jit
def strain_to_stress_cnn(x, W1, W2, W3, W4):
    B = x.shape[0]
    Bp = ((B + TB - 1) // TB) * TB

    # (L+1, Bp): features in sublanes, batch in lanes, constant-1 row appended.
    xa = jnp.concatenate(
        [x.astype(jnp.float32).T, jnp.ones((1, B), jnp.float32)], axis=0)
    xa = jnp.pad(xa, ((0, 0), (0, Bp - B)))

    full = lambda a: pl.BlockSpec(a.shape, lambda i: (0, 0))  # VMEM-resident

    out = pl.pallas_call(
        strain_cnn_kernel,
        out_shape=jax.ShapeDtypeStruct((OUT, Bp), jnp.float32),
        grid=(Bp // TB,),
        in_specs=[
            pl.BlockSpec((L + 1, TB), lambda i: (0, i)),      # x tile
            full(W1), full(W2), full(W3), full(W4),
        ],
        out_specs=pl.BlockSpec((OUT, TB), lambda i: (0, i)),
        compiler_params=pltpu.CompilerParams(
            dimension_semantics=("parallel",)),
    )(xa, W1, W2, W3, W4)

    return out[:, :B].T                                       # (B, 6)


# ----------------------------------------------------------------------------
# Parameter init (PyTorch-style uniform(-1/sqrt(fan_in), 1/sqrt(fan_in))).
# ----------------------------------------------------------------------------
def init_params(key):
    ks = jax.random.split(key, 8)

    def u(k, shape, fan_in):
        bound = 1.0 / np.sqrt(fan_in)
        return jax.random.uniform(k, shape, jnp.float32, -bound, bound)

    w_conv1 = u(ks[0], (C1, 1, 3), 1 * 3)
    b_conv1 = u(ks[1], (C1,), 1 * 3)
    w_conv3 = u(ks[2], (C2, C1, 3), C1 * 3)
    b_conv3 = u(ks[3], (C2,), C1 * 3)
    w_fc1 = u(ks[4], (H, C2 * L), C2 * L)     # PyTorch Linear weight: (out, in)
    b_fc1 = u(ks[5], (H,), C2 * L)
    w_fc2 = u(ks[6], (OUT, H), H)
    b_fc2 = u(ks[7], (OUT,), H)
    return w_conv1, b_conv1, w_conv3, b_conv3, w_fc1, b_fc1, w_fc2, b_fc2


# ----------------------------------------------------------------------------
# Pure-JAX reference (true Conv1d path) for correctness.
# ----------------------------------------------------------------------------
def reference_forward(x, params):
    w_conv1, b_conv1, w_conv3, b_conv3, w_fc1, b_fc1, w_fc2, b_fc2 = params
    xc = x[:, None, :].astype(jnp.float32)                      # (B,1,6) NCL
    dn = ("NCH", "OIH", "NCH")
    h = jax.lax.conv_general_dilated(xc, w_conv1, (1,), [(1, 1)],
                                     dimension_numbers=dn)
    h = jax.nn.relu(h + b_conv1[None, :, None])
    h = jax.lax.conv_general_dilated(h, w_conv3, (1,), [(1, 1)],
                                     dimension_numbers=dn)
    h = jax.nn.relu(h + b_conv3[None, :, None])
    h = h.reshape(x.shape[0], -1)                               # channel-major flatten
    h = jax.nn.relu(h @ w_fc1.T + b_fc1)
    return h @ w_fc2.T + b_fc2


if __name__ == "__main__":
    key = jax.random.PRNGKey(0)
    pkey, xkey, xkey2 = jax.random.split(key, 3)
    params = init_params(pkey)
    weights = prepare_weights(params)    # one-time, hoisted out of the hot path

    # small canonical test: batch=2, 6 strain components
    B = 2
    x = jax.random.normal(xkey, (B, L), jnp.float32)
    y = jax.block_until_ready(strain_to_stress_cnn(x, *weights))
    y_ref = jax.block_until_ready(reference_forward(x, params))
    np.testing.assert_allclose(np.asarray(y), np.asarray(y_ref),
                               rtol=1e-5, atol=1e-5)

    # second check: non-multiple-of-TB batch exercising >1 grid step + padding
    B2 = 300
    x2 = jax.random.normal(xkey2, (B2, L), jnp.float32)
    y2 = jax.block_until_ready(strain_to_stress_cnn(x2, *weights))
    y2_ref = jax.block_until_ready(reference_forward(x2, params))
    np.testing.assert_allclose(np.asarray(y2), np.asarray(y2_ref),
                               rtol=1e-5, atol=1e-5)

    print("KERNEL_OK")
</pallas_src>

<mosaic_0001>
module attributes {stable_mosaic.version = 11 : i64} {
  func.func @strain_cnn_kernel(%arg0: i32, %arg1: memref<7x256xf32, #tpu.memory_space<vmem>>, %arg2: memref<49x7xf32, #tpu.memory_space<vmem>>, %arg3: memref<97x49xf32, #tpu.memory_space<vmem>>, %arg4: memref<17x97xf32, #tpu.memory_space<vmem>>, %arg5: memref<6x17xf32, #tpu.memory_space<vmem>>, %arg6: memref<6x256xf32, #tpu.memory_space<vmem>>) attributes {dimension_semantics = [#tpu.dimension_semantics<parallel>], iteration_bounds = array<i64: 1>, scalar_prefetch = 0 : i64, scratch_operands = 0 : i64, tpu.core_type = #tpu.core_type<tc>, window_params = [{transform_indices = @transform_0, window_bounds = array<i64: 7, 256>}, {pipeline_mode = #tpu.pipeline_mode<synchronous>, transform_indices = @transform_1, window_bounds = array<i64: 49, 7>}, {pipeline_mode = #tpu.pipeline_mode<synchronous>, transform_indices = @transform_2, window_bounds = array<i64: 97, 49>}, {pipeline_mode = #tpu.pipeline_mode<synchronous>, transform_indices = @transform_3, window_bounds = array<i64: 17, 97>}, {pipeline_mode = #tpu.pipeline_mode<synchronous>, transform_indices = @transform_4, window_bounds = array<i64: 6, 17>}, {transform_indices = @transform_5, window_bounds = array<i64: 6, 256>}]} {
    %c0 = arith.constant 0 : index
    %c0_0 = arith.constant 0 : index
    %0 = vector.load %arg2[%c0, %c0_0] : memref<49x7xf32, #tpu.memory_space<vmem>>, vector<49x7xf32>
    %c0_1 = arith.constant 0 : index
    %c0_2 = arith.constant 0 : index
    %1 = vector.load %arg1[%c0_1, %c0_2] : memref<7x256xf32, #tpu.memory_space<vmem>>, vector<7x256xf32>
    %cst = arith.constant dense<0.000000e+00> : vector<49x256xf32>
    %2 = tpu.matmul %0, %1, %cst {dimension_numbers = #tpu.dot_dimension_numbers<[1], [0], [0], [1], [0, 0, 1, 1], [], []>} : vector<49x7xf32>, vector<7x256xf32>, vector<49x256xf32> -> vector<49x256xf32>
    %cst_3 = arith.constant 0.000000e+00 : f32
    %3 = vector.broadcast %cst_3 : f32 to vector<49x256xf32>
    %4 = arith.maximumf %2, %3 : vector<49x256xf32>
    %c0_4 = arith.constant 0 : index
    %c0_5 = arith.constant 0 : index
    %5 = vector.load %arg3[%c0_4, %c0_5] : memref<97x49xf32, #tpu.memory_space<vmem>>, vector<97x49xf32>
    %cst_6 = arith.constant dense<0.000000e+00> : vector<97x256xf32>
    %6 = tpu.matmul %5, %4, %cst_6 {dimension_numbers = #tpu.dot_dimension_numbers<[1], [0], [0], [1], [0, 0, 1, 1], [], []>} : vector<97x49xf32>, vector<49x256xf32>, vector<97x256xf32> -> vector<97x256xf32>
    %cst_7 = arith.constant 0.000000e+00 : f32
    %7 = vector.broadcast %cst_7 : f32 to vector<97x256xf32>
    %8 = arith.maximumf %6, %7 : vector<97x256xf32>
    %c0_8 = arith.constant 0 : index
    %c0_9 = arith.constant 0 : index
    %9 = vector.load %arg4[%c0_8, %c0_9] : memref<17x97xf32, #tpu.memory_space<vmem>>, vector<17x97xf32>
    %cst_10 = arith.constant dense<0.000000e+00> : vector<17x256xf32>
    %10 = tpu.matmul %9, %8, %cst_10 {dimension_numbers = #tpu.dot_dimension_numbers<[1], [0], [0], [1], [0, 0, 1, 1], [], []>} : vector<17x97xf32>, vector<97x256xf32>, vector<17x256xf32> -> vector<17x256xf32>
    %cst_11 = arith.constant 0.000000e+00 : f32
    %11 = vector.broadcast %cst_11 : f32 to vector<17x256xf32>
    %12 = arith.maximumf %10, %11 : vector<17x256xf32>
    %c0_12 = arith.constant 0 : index
    %c0_13 = arith.constant 0 : index
    %13 = vector.load %arg5[%c0_12, %c0_13] : memref<6x17xf32, #tpu.memory_space<vmem>>, vector<6x17xf32>
    %cst_14 = arith.constant dense<0.000000e+00> : vector<6x256xf32>
    %14 = tpu.matmul %13, %12, %cst_14 {dimension_numbers = #tpu.dot_dimension_numbers<[1], [0], [0], [1], [0, 0, 1, 1], [], []>} : vector<6x17xf32>, vector<17x256xf32>, vector<6x256xf32> -> vector<6x256xf32>
    %c0_15 = arith.constant 0 : index
    %c0_16 = arith.constant 0 : index
    %15 = vector.load %arg6[%c0_15, %c0_16] : memref<6x256xf32, #tpu.memory_space<vmem>>, vector<6x256xf32>
    tpu.vector_store %arg6[%c0_15, %c0_16], %14 {strides = array<i32>} : memref<6x256xf32, #tpu.memory_space<vmem>>, vector<6x256xf32>,
    return
  }
  func.func @transform_0(%arg0: i32) -> (i32, i32) {
    %c0_i32 = arith.constant 0 : i32
    %c0_i32_0 = arith.constant 0 : i32
    return %c0_i32, %arg0 : i32, i32
  }
  func.func @transform_1(%arg0: i32) -> (i32, i32) {
    %c0_i32 = arith.constant 0 : i32
    %c0_i32_0 = arith.constant 0 : i32
    %c0_i32_1 = arith.constant 0 : i32
    return %c0_i32, %c0_i32_0 : i32, i32
  }
  func.func @transform_2(%arg0: i32) -> (i32, i32) {
    %c0_i32 = arith.constant 0 : i32
    %c0_i32_0 = arith.constant 0 : i32
    %c0_i32_1 = arith.constant 0 : i32
    return %c0_i32, %c0_i32_0 : i32, i32
  }
  func.func @transform_3(%arg0: i32) -> (i32, i32) {
    %c0_i32 = arith.constant 0 : i32
    %c0_i32_0 = arith.constant 0 : i32
    %c0_i32_1 = arith.constant 0 : i32
    return %c0_i32, %c0_i32_0 : i32, i32
  }
  func.func @transform_4(%arg0: i32) -> (i32, i32) {
    %c0_i32 = arith.constant 0 : i32
    %c0_i32_0 = arith.constant 0 : i32
    %c0_i32_1 = arith.constant 0 : i32
    return %c0_i32, %c0_i32_0 : i32, i32
  }
  func.func @transform_5(%arg0: i32) -> (i32, i32) {
    %c0_i32 = arith.constant 0 : i32
    %c0_i32_0 = arith.constant 0 : i32
    return %c0_i32, %arg0 : i32, i32
  }
}

</mosaic_0001>

<llo_original>
// kernel: strain_to_stress_cnn.1
$region0: #{strain_to_stress_cnn.1}
  #allocation0 [shape = 'u32[]', space=smem, size = 0x4, offset = 0x4, fixed_abs, tag = 'smem constant byte address 0x4 - core index']
  #allocation1 [shape = 'u32[144,128]{1,0:T(1,128)}', space=vmem, size = 0x12000, scoped, tag = 'internal scratch']
  %s0 = inlined_call_operand.vmem [shape: f32[7,256], index: 0, kind: input, shape index: {}]
  %s1 = inlined_call_operand.vmem [shape: f32[49,7], index: 1, kind: input, shape index: {}]
  %s2 = inlined_call_operand.vmem [shape: f32[97,49], index: 2, kind: input, shape index: {}]
  %s3 = inlined_call_operand.vmem [shape: f32[17,97], index: 3, kind: input, shape index: {}]
  %s4 = inlined_call_operand.vmem [shape: f32[6,17], index: 4, kind: input, shape index: {}]
  %s5 = inlined_call_operand.vmem [shape: f32[6,256], index: 5, kind: output, shape index: {}]
  %s6 = sld [smem:[#allocation0]]
  $region30: #{strain_to_stress_cnn.1} parent=0
    _
  %s8 = ssub.s32 1, %s6
  %s9 = scalar_select 0, %s8, %s6
  // Predicated region
  $region2: #{strain_to_stress_cnn.1} parent=0 // pred_check
    _
  $region3: #{strain_to_stress_cnn.1} parent=0 // pred_check_branch
    %11 = sbr.rel (0) target = $region5
  $region4: #{strain_to_stress_cnn.1} parent=0 // pred_region
    _
  $region5: #{strain_to_stress_cnn.1} parent=0 // pred_fallthru
    _
  // Predicated region
  $region6: #{strain_to_stress_cnn.1} parent=0 // pred_check
    _
  $region7: #{strain_to_stress_cnn.1} parent=0 // pred_check_branch
    %13 = sbr.rel (0) target = $region9
  $region8: #{strain_to_stress_cnn.1} parent=0 // pred_region
    _
  $region9: #{strain_to_stress_cnn.1} parent=0 // pred_fallthru
    _
  // Predicated region
  $region10: #{strain_to_stress_cnn.1} parent=0 // pred_check
    _
  $region11: #{strain_to_stress_cnn.1} parent=0 // pred_check_branch
    %15 = sbr.rel (0) target = $region13
  $region12: #{strain_to_stress_cnn.1} parent=0 // pred_region
    _
  $region13: #{strain_to_stress_cnn.1} parent=0 // pred_fallthru
    _
  // Predicated region
  $region14: #{strain_to_stress_cnn.1} parent=0 // pred_check
    _
  $region15: #{strain_to_stress_cnn.1} parent=0 // pred_check_branch
    %17 = sbr.rel (0) target = $region17
  $region16: #{strain_to_stress_cnn.1} parent=0 // pred_region
    _
  $region17: #{strain_to_stress_cnn.1} parent=0 // pred_fallthru
    _
  // Predicated region
  $region18: #{strain_to_stress_cnn.1} parent=0 // pred_check
    _
  $region19: #{strain_to_stress_cnn.1} parent=0 // pred_check_branch
    %19 = sbr.rel (0) target = $region21
  $region20: #{strain_to_stress_cnn.1} parent=0 // pred_region
    _
  $region21: #{strain_to_stress_cnn.1} parent=0 // pred_fallthru
    _
  %v20 = vld [vmem:[%s1] sm:$0xff]
  %v21 = vld [vmem:[%s1 + $0x8] sm:$0xff]
  %v22 = vld [vmem:[%s1 + $0x10] sm:$0xff]
  %v23 = vld [vmem:[%s1 + $0x18] sm:$0xff]
  %v24 = vld [vmem:[%s1 + $0x20] sm:$0xff]
  %v25 = vld [vmem:[%s1 + $0x28] sm:$0xff]
  %v26 = vld [vmem:[%s1 + $0x30] sm:$0x1]
  %v27 = vld [vmem:[%s0] sm:$0x7f]
  %v28 = vld [vmem:[%s0 + $0x8] sm:$0x7f]
  %vm29 = vcmask 56320
  %v31 = vsel %vm29, %v20, 0
  %v34 = vsel %vm29, %v21, 0
  %v37 = vsel %vm29, %v22, 0
  %v40 = vsel %vm29, %v23, 0
  %v43 = vsel %vm29, %v24, 0
  %v46 = vsel %vm29, %v25, 0
  %v49 = vsel %vm29, %v26, 0
  %vm51 = vcmask 1046528
  %v53 = vsel %vm51, %v27, 0
  %v56 = vsel %vm51, %v28, 0
  %58 = vmatprep.subr.mxu0 %v56
  %59 = vmatpush1.msra.mxu0 %v53
  %60 = vmatprep.subr.mxu0 0.0
  %61 = vmatpush1.msra.mxu0 0.0
  %62 = vmatprep.subr.mxu0 0.0
  %63 = vmatpush1.msra.mxu0 0.0
  %64 = vmatprep.subr.mxu0 0.0
  %65 = vmatpush1.msra.mxu0 0.0
  %66 = vmatprep.subr.mxu0 0.0
  %67 = vmatpush1.msra.mxu0 0.0
  %68 = vmatprep.subr.mxu0 0.0
  %69 = vmatpush1.msra.mxu0 0.0
  %70 = vmatprep.subr.mxu0 0.0
  %71 = vmatpush1.msra.mxu0 0.0
  %72 = vmatprep.subr.mxu0 0.0
  %73 = vmatpush1.msra.mxu0 0.0
  %74 = vmatprep.subr.mxu0 0.0
  %75 = vmatpush1.msra.mxu0 0.0
  %76 = vmatprep.subr.mxu0 0.0
  %77 = vmatpush1.msra.mxu0 0.0
  %78 = vmatprep.subr.mxu0 0.0
  %79 = vmatpush1.msra.mxu0 0.0
  %80 = vmatprep.subr.mxu0 0.0
  %81 = vmatpush1.msra.mxu0 0.0
  %82 = vmatprep.subr.mxu0 0.0
  %83 = vmatpush1.msra.mxu0 0.0
  %84 = vmatprep.subr.mxu0 0.0
  %85 = vmatpush1.msra.mxu0 0.0
  %86 = vmatprep.subr.mxu0 0.0
  %87 = vmatpush1.msra.mxu0 0.0
  %88 = vmatprep.subr.mxu0 0.0
  %89 = vmatpush1.msra.mxu0 0.0
  %90 = vmatprep.subr.mxu0 0.0
  %91 = vmatpush1.msra.mxu0 0.0
  %92 = vmatprep.subr.mxu0 0.0
  %93 = vmatpush1.msra.mxu0 0.0
  %94 = vmatprep.subr.mxu0 0.0
  %95 = vmatpush1.msra.mxu0 0.0
  %96 = vmatprep.subr.mxu0 0.0
  %97 = vmatpush1.msra.mxu0 0.0
  %98 = vmatprep.subr.mxu0 0.0
  %99 = vmatpush1.msra.mxu0 0.0
  %100 = vmatprep.subr.mxu0 0.0
  %101 = vmatpush1.msra.mxu0 0.0
  %102 = vmatprep.subr.mxu0 0.0
  %103 = vmatpush1.msra.mxu0 0.0
  %104 = vmatprep.subr.mxu0 0.0
  %105 = vmatpush1.msra.mxu0 0.0
  %106 = vmatprep.subr.mxu0 0.0
  %107 = vmatpush1.msra.mxu0 0.0
  %108 = vmatprep.subr.mxu0 0.0
  %109 = vmatpush1.msra.mxu0 0.0
  %110 = vmatprep.subr.mxu0 0.0
  %111 = vmatpush1.msra.mxu0 0.0
  %112 = vmatprep.subr.mxu0 0.0
  %113 = vmatpush1.msra.mxu0 0.0
  %114 = vmatprep.subr.mxu0 0.0
  %115 = vmatpush1.msra.mxu0 0.0
  %116 = vmatprep.subr.mxu0 0.0
  %117 = vmatpush1.msra.mxu0 0.0
  %118 = vmatprep.subr.mxu0 0.0
  %119 = vmatpush1.msra.mxu0 0.0
  %120 = vmatprep.subr.mxu0 0.0
  %121 = vmatpush1.msra.mxu0 0.0
  %122 = vmatprep.mubr.f32.mxu0 0.0
  %123 = vmatmul.mubr.f32.gmra.mrb[0].mxu0 %v31
  %v124 = vpop.f32.mrb[0].mxu0
  %v125 = vadd.f32 0.0, %v124
  %v126 = vpop.f32.mrb[0].mxu0
  %v127 = vadd.f32 0.0, %v126
  %128 = vmatprep.mubr.f32.mxu0 0.0
  %129 = vmatmul.mubr.f32.gmra.mrb[0].mxu0 %v34
  %v130 = vpop.f32.mrb[0].mxu0
  %v131 = vadd.f32 0.0, %v130
  %v132 = vpop.f32.mrb[0].mxu0
  %v133 = vadd.f32 0.0, %v132
  %134 = vmatprep.mubr.f32.mxu0 0.0
  %135 = vmatmul.mubr.f32.gmra.mrb[0].mxu0 %v37
  %v136 = vpop.f32.mrb[0].mxu0
  %v137 = vadd.f32 0.0, %v136
  %v138 = vpop.f32.mrb[0].mxu0
  %v139 = vadd.f32 0.0, %v138
  %140 = vmatprep.mubr.f32.mxu0 0.0
  %141 = vmatmul.mubr.f32.gmra.mrb[0].mxu0 %v40
  %v142 = vpop.f32.mrb[0].mxu0
  %v143 = vadd.f32 0.0, %v142
  %v144 = vpop.f32.mrb[0].mxu0
  %v145 = vadd.f32 0.0, %v144
  %146 = vmatprep.mubr.f32.mxu0 0.0
  %147 = vmatmul.mubr.f32.gmra.mrb[0].mxu0 %v43
  %v148 = vpop.f32.mrb[0].mxu0
  %v149 = vadd.f32 0.0, %v148
  %v150 = vpop.f32.mrb[0].mxu0
  %v151 = vadd.f32 0.0, %v150
  %152 = vmatprep.mubr.f32.mxu0 0.0
  %153 = vmatmul.mubr.f32.gmra.mrb[0].mxu0 %v46
  %v154 = vpop.f32.mrb[0].mxu0
  %v155 = vadd.f32 0.0, %v154
  %v156 = vpop.f32.mrb[0].mxu0
  %v157 = vadd.f32 0.0, %v156
  %158 = vmatprep.mubr.f32.mxu0 0.0
  %159 = vmatmul.mubr.f32.gmra.mrb[0].mxu0 %v49
  %v160 = vpop.f32.mrb[0].mxu0
  %v161 = vadd.f32 0.0, %v160
  %v162 = vpop.f32.mrb[0].mxu0
  %v163 = vadd.f32 0.0, %v162
  %164 = vdwg.mxu0
  %v165 = vmax.f32 %v125, 0.0
  %v166 = vmax.f32 %v127, 0.0
  %v167 = vmax.f32 %v131, 0.0
  %v168 = vmax.f32 %v133, 0.0
  %v169 = vmax.f32 %v137, 0.0
  %v170 = vmax.f32 %v139, 0.0
  %v171 = vmax.f32 %v143, 0.0
  %v172 = vmax.f32 %v145, 0.0
  %v173 = vmax.f32 %v149, 0.0
  %v174 = vmax.f32 %v151, 0.0
  %v175 = vmax.f32 %v155, 0.0
  %v176 = vmax.f32 %v157, 0.0
  %v177 = vmax.f32 %v161, 0.0
  %v178 = vmax.f32 %v163, 0.0
  %v179 = vld [vmem:[%s2] sm:$0xff]
  %v180 = vld [vmem:[%s2 + $0x8] sm:$0xff]
  %v181 = vld [vmem:[%s2 + $0x10] sm:$0xff]
  %v182 = vld [vmem:[%s2 + $0x18] sm:$0xff]
  %v183 = vld [vmem:[%s2 + $0x20] sm:$0xff]
  %v184 = vld [vmem:[%s2 + $0x28] sm:$0xff]
  %v185 = vld [vmem:[%s2 + $0x30] sm:$0xff]
  %v186 = vld [vmem:[%s2 + $0x38] sm:$0xff]
  %v187 = vld [vmem:[%s2 + $0x40] sm:$0xff]
  %v188 = vld [vmem:[%s2 + $0x48] sm:$0xff]
  %v189 = vld [vmem:[%s2 + $0x50] sm:$0xff]
  %v190 = vld [vmem:[%s2 + $0x58] sm:$0xff]
  %v191 = vld [vmem:[%s2 + $0x60] sm:$0x1]
  %vm192 = vcmask 400384
  %v194 = vsel %vm192, %v179, 0
  %v197 = vsel %vm192, %v180, 0
  %v200 = vsel %vm192, %v181, 0
  %v203 = vsel %vm192, %v182, 0
  %v206 = vsel %vm192, %v183, 0
  %v209 = vsel %vm192, %v184, 0
  %v212 = vsel %vm192, %v185, 0
  %v215 = vsel %vm192, %v186, 0
  %v218 = vsel %vm192, %v187, 0
  %v221 = vsel %vm192, %v188, 0
  %v224 = vsel %vm192, %v189, 0
  %v227 = vsel %vm192, %v190, 0
  %v230 = vsel %vm192, %v191, 0
  %vm232 = vcmask 1040384
  %v234 = vsel %vm232, %v177, 0
  %v237 = vsel %vm232, %v178, 0
  %239 = vmatprep.subr.mxu0 %v166
  %240 = vmatpush1.msra.mxu0 %v165
  %241 = vmatprep.subr.mxu0 %v168
  %242 = vmatpush1.msra.mxu0 %v167
  %243 = vmatprep.subr.mxu0 %v170
  %244 = vmatpush1.msra.mxu0 %v169
  %245 = vmatprep.subr.mxu0 %v172
  %246 = vmatpush1.msra.mxu0 %v171
  %247 = vmatprep.subr.mxu0 %v174
  %248 = vmatpush1.msra.mxu0 %v173
  %249 = vmatprep.subr.mxu0 %v176
  %250 = vmatpush1.msra.mxu0 %v175
  %251 = vmatprep.subr.mxu0 %v237
  %252 = vmatpush1.msra.mxu0 %v234
  %253 = vmatprep.subr.mxu0 0.0
  %254 = vmatpush1.msra.mxu0 0.0
  %255 = vmatprep.subr.mxu0 0.0
  %256 = vmatpush1.msra.mxu0 0.0
  %257 = vmatprep.subr.mxu0 0.0
  %258 = vmatpush1.msra.mxu0 0.0
  %259 = vmatprep.subr.mxu0 0.0
  %260 = vmatpush1.msra.mxu0 0.0
  %261 = vmatprep.subr.mxu0 0.0
  %262 = vmatpush1.msra.mxu0 0.0
  %263 = vmatprep.subr.mxu0 0.0
  %264 = vmatpush1.msra.mxu0 0.0
  %265 = vmatprep.subr.mxu0 0.0
  %266 = vmatpush1.msra.mxu0 0.0
  %267 = vmatprep.subr.mxu0 0.0
  %268 = vmatpush1.msra.mxu0 0.0
  %269 = vmatprep.subr.mxu0 0.0
  %270 = vmatpush1.msra.mxu0 0.0
  %271 = vmatprep.subr.mxu0 0.0
  %272 = vmatpush1.msra.mxu0 0.0
  %273 = vmatprep.subr.mxu0 0.0
  %274 = vmatpush1.msra.mxu0 0.0
  %275 = vmatprep.subr.mxu0 0.0
  %276 = vmatpush1.msra.mxu0 0.0
  %277 = vmatprep.subr.mxu0 0.0
  %278 = vmatpush1.msra.mxu0 0.0
  %279 = vmatprep.subr.mxu0 0.0
  %280 = vmatpush1.msra.mxu0 0.0
  %281 = vmatprep.subr.mxu0 0.0
  %282 = vmatpush1.msra.mxu0 0.0
  %283 = vmatprep.subr.mxu0 0.0
  %284 = vmatpush1.msra.mxu0 0.0
  %285 = vmatprep.subr.mxu0 0.0
  %286 = vmatpush1.msra.mxu0 0.0
  %287 = vmatprep.subr.mxu0 0.0
  %288 = vmatpush1.msra.mxu0 0.0
  %289 = vmatprep.subr.mxu0 0.0
  %290 = vmatpush1.msra.mxu0 0.0
  %291 = vmatprep.subr.mxu0 0.0
  %292 = vmatpush1.msra.mxu0 0.0
  %293 = vmatprep.subr.mxu0 0.0
  %294 = vmatpush1.msra.mxu0 0.0
  %295 = vmatprep.subr.mxu0 0.0
  %296 = vmatpush1.msra.mxu0 0.0
  %297 = vmatprep.subr.mxu0 0.0
  %298 = vmatpush1.msra.mxu0 0.0
  %299 = vmatprep.subr.mxu0 0.0
  %300 = vmatpush1.msra.mxu0 0.0
  %301 = vmatprep.subr.mxu0 0.0
  %302 = vmatpush1.msra.mxu0 0.0
  %303 = vmatprep.mubr.f32.mxu0 0.0
  %304 = vmatmul.mubr.f32.gmra.mrb[0].mxu0 %v194
  %v305 = vpop.f32.mrb[0].mxu0
  %v306 = vadd.f32 0.0, %v305
  %v307 = vpop.f32.mrb[0].mxu0
  %v308 = vadd.f32 0.0, %v307
  %309 = vmatprep.mubr.f32.mxu0 0.0
  %310 = vmatmul.mubr.f32.gmra.mrb[0].mxu0 %v197
  %v311 = vpop.f32.mrb[0].mxu0
  %v312 = vadd.f32 0.0, %v311
  %v313 = vpop.f32.mrb[0].mxu0
  %v314 = vadd.f32 0.0, %v313
  %315 = vmatprep.mubr.f32.mxu0 0.0
  %316 = vmatmul.mubr.f32.gmra.mrb[0].mxu0 %v200
  %v317 = vpop.f32.mrb[0].mxu0
  %v318 = vadd.f32 0.0, %v317
  %v319 = vpop.f32.mrb[0].mxu0
  %v320 = vadd.f32 0.0, %v319
  %321 = vmatprep.mubr.f32.mxu0 0.0
  %322 = vmatmul.mubr.f32.gmra.mrb[0].mxu0 %v203
  %v323 = vpop.f32.mrb[0].mxu0
  %v324 = vadd.f32 0.0, %v323
  %v325 = vpop.f32.mrb[0].mxu0
  %v326 = vadd.f32 0.0, %v325
  %327 = vmatprep.mubr.f32.mxu0 0.0
  %328 = vmatmul.mubr.f32.gmra.mrb[0].mxu0 %v206
  %v329 = vpop.f32.mrb[0].mxu0
  %v330 = vadd.f32 0.0, %v329
  %v331 = vpop.f32.mrb[0].mxu0
  %v332 = vadd.f32 0.0, %v331
  %333 = vmatprep.mubr.f32.mxu0 0.0
  %334 = vmatmul.mubr.f32.gmra.mrb[0].mxu0 %v209
  %v335 = vpop.f32.mrb[0].mxu0
  %v336 = vadd.f32 0.0, %v335
  %v337 = vpop.f32.mrb[0].mxu0
  %v338 = vadd.f32 0.0, %v337
  %339 = vmatprep.mubr.f32.mxu0 0.0
  %340 = vmatmul.mubr.f32.gmra.mrb[0].mxu0 %v212
  %v341 = vpop.f32.mrb[0].mxu0
  %v342 = vadd.f32 0.0, %v341
  %v343 = vpop.f32.mrb[0].mxu0
  %v344 = vadd.f32 0.0, %v343
  %345 = vmatprep.mubr.f32.mxu0 0.0
  %346 = vmatmul.mubr.f32.gmra.mrb[0].mxu0 %v215
  %v347 = vpop.f32.mrb[0].mxu0
  %v348 = vadd.f32 0.0, %v347
  %v349 = vpop.f32.mrb[0].mxu0
  %v350 = vadd.f32 0.0, %v349
  %351 = vmatprep.mubr.f32.mxu0 0.0
  %352 = vmatmul.mubr.f32.gmra.mrb[0].mxu0 %v218
  %v353 = vpop.f32.mrb[0].mxu0
  %v354 = vadd.f32 0.0, %v353
  %v355 = vpop.f32.mrb[0].mxu0
  %v356 = vadd.f32 0.0, %v355
  %357 = vmatprep.mubr.f32.mxu0 0.0
  %358 = vmatmul.mubr.f32.gmra.mrb[0].mxu0 %v221
  %v359 = vpop.f32.mrb[0].mxu0
  %v360 = vadd.f32 0.0, %v359
  %v361 = vpop.f32.mrb[0].mxu0
  %v362 = vadd.f32 0.0, %v361
  %363 = vmatprep.mubr.f32.mxu0 0.0
  %364 = vmatmul.mubr.f32.gmra.mrb[0].mxu0 %v224
  %v365 = vpop.f32.mrb[0].mxu0
  %v366 = vadd.f32 0.0, %v365
  %v367 = vpop.f32.mrb[0].mxu0
  %v368 = vadd.f32 0.0, %v367
  %369 = vmatprep.mubr.f32.mxu0 0.0
  %370 = vmatmul.mubr.f32.gmra.mrb[0].mxu0 %v227
  %v371 = vpop.f32.mrb[0].mxu0
  %v372 = vadd.f32 0.0, %v371
  %v373 = vpop.f32.mrb[0].mxu0
  %v374 = vadd.f32 0.0, %v373
  %375 = vmatprep.mubr.f32.mxu0 0.0
  %376 = vmatmul.mubr.f32.gmra.mrb[0].mxu0 %v230
  %v377 = vpop.f32.mrb[0].mxu0
  %v378 = vadd.f32 0.0, %v377
  %v379 = vpop.f32.mrb[0].mxu0
  %v380 = vadd.f32 0.0, %v379
  %381 = vdwg.mxu0
  %v382 = vmax.f32 %v306, 0.0
  %v383 = vmax.f32 %v308, 0.0
  %v384 = vmax.f32 %v312, 0.0
  %v385 = vmax.f32 %v314, 0.0
  %v386 = vmax.f32 %v318, 0.0
  %v387 = vmax.f32 %v320, 0.0
  %v388 = vmax.f32 %v324, 0.0
  %v389 = vmax.f32 %v326, 0.0
  %v390 = vmax.f32 %v330, 0.0
  %v391 = vmax.f32 %v332, 0.0
  %v392 = vmax.f32 %v336, 0.0
  %v393 = vmax.f32 %v338, 0.0
  %v394 = vmax.f32 %v342, 0.0
  %v395 = vmax.f32 %v344, 0.0
  %v396 = vmax.f32 %v348, 0.0
  %v397 = vmax.f32 %v350, 0.0
  %v398 = vmax.f32 %v354, 0.0
  %v399 = vmax.f32 %v356, 0.0
  %v400 = vmax.f32 %v360, 0.0
  %v401 = vmax.f32 %v362, 0.0
  %v402 = vmax.f32 %v366, 0.0
  %v403 = vmax.f32 %v368, 0.0
  %v404 = vmax.f32 %v372, 0.0
  %v405 = vmax.f32 %v374, 0.0
  %v406 = vmax.f32 %v378, 0.0
  %v407 = vmax.f32 %v380, 0.0
  %v408 = vld [vmem:[%s3] sm:$0xff]
  %v409 = vld [vmem:[%s3 + $0x8] sm:$0xff]
  %v410 = vld [vmem:[%s3 + $0x10] sm:$0x1]
  %vm411 = vcmask 793600
  %v413 = vsel %vm411, %v408, 0
  %v416 = vsel %vm411, %v409, 0
  %v419 = vsel %vm411, %v410, 0
  %v422 = vsel %vm232, %v406, 0
  %v425 = vsel %vm232, %v407, 0
  %427 = vmatprep.subr.mxu0 %v383
  %428 = vmatpush1.msra.mxu0 %v382
  %429 = vmatprep.subr.mxu0 %v385
  %430 = vmatpush1.msra.mxu0 %v384
  %431 = vmatprep.subr.mxu0 %v387
  %432 = vmatpush1.msra.mxu0 %v386
  %433 = vmatprep.subr.mxu0 %v389
  %434 = vmatpush1.msra.mxu0 %v388
  %435 = vmatprep.subr.mxu0 %v391
  %436 = vmatpush1.msra.mxu0 %v390
  %437 = vmatprep.subr.mxu0 %v393
  %438 = vmatpush1.msra.mxu0 %v392
  %439 = vmatprep.subr.mxu0 %v395
  %440 = vmatpush1.msra.mxu0 %v394
  %441 = vmatprep.subr.mxu0 %v397
  %442 = vmatpush1.msra.mxu0 %v396
  %443 = vmatprep.subr.mxu0 %v399
  %444 = vmatpush1.msra.mxu0 %v398
  %445 = vmatprep.subr.mxu0 %v401
  %446 = vmatpush1.msra.mxu0 %v400
  %447 = vmatprep.subr.mxu0 %v403
  %448 = vmatpush1.msra.mxu0 %v402
  %449 = vmatprep.subr.mxu0 %v405
  %450 = vmatpush1.msra.mxu0 %v404
  %451 = vmatprep.subr.mxu0 %v425
  %452 = vmatpush1.msra.mxu0 %v422
  %453 = vmatprep.subr.mxu0 0.0
  %454 = vmatpush1.msra.mxu0 0.0
  %455 = vmatprep.subr.mxu0 0.0
  %456 = vmatpush1.msra.mxu0 0.0
  %457 = vmatprep.subr.mxu0 0.0
  %458 = vmatpush1.msra.mxu0 0.0
  %459 = vmatprep.subr.mxu0 0.0
  %460 = vmatpush1.msra.mxu0 0.0
  %461 = vmatprep.subr.mxu0 0.0
  %462 = vmatpush1.msra.mxu0 0.0
  %463 = vmatprep.subr.mxu0 0.0
  %464 = vmatpush1.msra.mxu0 0.0
  %465 = vmatprep.subr.mxu0 0.0
  %466 = vmatpush1.msra.mxu0 0.0
  %467 = vmatprep.subr.mxu0 0.0
  %468 = vmatpush1.msra.mxu0 0.0
  %469 = vmatprep.subr.mxu0 0.0
  %470 = vmatpush1.msra.mxu0 0.0
  %471 = vmatprep.subr.mxu0 0.0
  %472 = vmatpush1.msra.mxu0 0.0
  %473 = vmatprep.subr.mxu0 0.0
  %474 = vmatpush1.msra.mxu0 0.0
  %475 = vmatprep.subr.mxu0 0.0
  %476 = vmatpush1.msra.mxu0 0.0
  %477 = vmatprep.subr.mxu0 0.0
  %478 = vmatpush1.msra.mxu0 0.0
  %479 = vmatprep.subr.mxu0 0.0
  %480 = vmatpush1.msra.mxu0 0.0
  %481 = vmatprep.subr.mxu0 0.0
  %482 = vmatpush1.msra.mxu0 0.0
  %483 = vmatprep.subr.mxu0 0.0
  %484 = vmatpush1.msra.mxu0 0.0
  %485 = vmatprep.subr.mxu0 0.0
  %486 = vmatpush1.msra.mxu0 0.0
  %487 = vmatprep.subr.mxu0 0.0
  %488 = vmatpush1.msra.mxu0 0.0
  %489 = vmatprep.subr.mxu0 0.0
  %490 = vmatpush1.msra.mxu0 0.0
  %491 = vmatprep.mubr.f32.mxu0 0.0
  %492 = vmatmul.mubr.f32.gmra.mrb[0].mxu0 %v413
  %v493 = vpop.f32.mrb[0].mxu0
  %v494 = vadd.f32 0.0, %v493
  %v495 = vpop.f32.mrb[0].mxu0
  %v496 = vadd.f32 0.0, %v495
  %497 = vmatprep.mubr.f32.mxu0 0.0
  %498 = vmatmul.mubr.f32.gmra.mrb[0].mxu0 %v416
  %v499 = vpop.f32.mrb[0].mxu0
  %v500 = vadd.f32 0.0, %v499
  %v501 = vpop.f32.mrb[0].mxu0
  %v502 = vadd.f32 0.0, %v501
  %503 = vmatprep.mubr.f32.mxu0 0.0
  %504 = vmatmul.mubr.f32.gmra.mrb[0].mxu0 %v419
  %v505 = vpop.f32.mrb[0].mxu0
  %v506 = vadd.f32 0.0, %v505
  %v507 = vpop.f32.mrb[0].mxu0
  %v508 = vadd.f32 0.0, %v507
  %509 = vdwg.mxu0
  %v510 = vmax.f32 %v494, 0.0
  %v511 = vmax.f32 %v496, 0.0
  %v512 = vmax.f32 %v500, 0.0
  %v513 = vmax.f32 %v502, 0.0
  %v514 = vmax.f32 %v506, 0.0
  %v515 = vmax.f32 %v508, 0.0
  %v516 = vld [vmem:[%s4] sm:$0x3f]
  %vm517 = vcmask 138240
  %v519 = vsel %vm517, %v516, 0
  %v522 = vsel %vm232, %v514, 0
  %v525 = vsel %vm232, %v515, 0
  %527 = vmatprep.subr.mxu0 %v511
  %528 = vmatpush1.msra.mxu0 %v510
  %529 = vmatprep.subr.mxu0 %v513
  %530 = vmatpush1.msra.mxu0 %v512
  %531 = vmatprep.subr.mxu0 %v525
  %532 = vmatpush1.msra.mxu0 %v522
  %533 = vmatprep.subr.mxu0 0.0
  %534 = vmatpush1.msra.mxu0 0.0
  %535 = vmatprep.subr.mxu0 0.0
  %536 = vmatpush1.msra.mxu0 0.0
  %537 = vmatprep.subr.mxu0 0.0
  %538 = vmatpush1.msra.mxu0 0.0
  %539 = vmatprep.subr.mxu0 0.0
  %540 = vmatpush1.msra.mxu0 0.0
  %541 = vmatprep.subr.mxu0 0.0
  %542 = vmatpush1.msra.mxu0 0.0
  %543 = vmatprep.subr.mxu0 0.0
  %544 = vmatpush1.msra.mxu0 0.0
  %545 = vmatprep.subr.mxu0 0.0
  %546 = vmatpush1.msra.mxu0 0.0
  %547 = vmatprep.subr.mxu0 0.0
  %548 = vmatpush1.msra.mxu0 0.0
  %549 = vmatprep.subr.mxu0 0.0
  %550 = vmatpush1.msra.mxu0 0.0
  %551 = vmatprep.subr.mxu0 0.0
  %552 = vmatpush1.msra.mxu0 0.0
  %553 = vmatprep.subr.mxu0 0.0
  %554 = vmatpush1.msra.mxu0 0.0
  %555 = vmatprep.subr.mxu0 0.0
  %556 = vmatpush1.msra.mxu0 0.0
  %557 = vmatprep.subr.mxu0 0.0
  %558 = vmatpush1.msra.mxu0 0.0
  %559 = vmatprep.subr.mxu0 0.0
  %560 = vmatpush1.msra.mxu0 0.0
  %561 = vmatprep.subr.mxu0 0.0
  %562 = vmatpush1.msra.mxu0 0.0
  %563 = vmatprep.subr.mxu0 0.0
  %564 = vmatpush1.msra.mxu0 0.0
  %565 = vmatprep.subr.mxu0 0.0
  %566 = vmatpush1.msra.mxu0 0.0
  %567 = vmatprep.subr.mxu0 0.0
  %568 = vmatpush1.msra.mxu0 0.0
  %569 = vmatprep.subr.mxu0 0.0
  %570 = vmatpush1.msra.mxu0 0.0
  %571 = vmatprep.subr.mxu0 0.0
  %572 = vmatpush1.msra.mxu0 0.0
  %573 = vmatprep.subr.mxu0 0.0
  %574 = vmatpush1.msra.mxu0 0.0
  %575 = vmatprep.subr.mxu0 0.0
  %576 = vmatpush1.msra.mxu0 0.0
  %577 = vmatprep.subr.mxu0 0.0
  %578 = vmatpush1.msra.mxu0 0.0
  %579 = vmatprep.subr.mxu0 0.0
  %580 = vmatpush1.msra.mxu0 0.0
  %581 = vmatprep.subr.mxu0 0.0
  %582 = vmatpush1.msra.mxu0 0.0
  %583 = vmatprep.subr.mxu0 0.0
  %584 = vmatpush1.msra.mxu0 0.0
  %585 = vmatprep.subr.mxu0 0.0
  %586 = vmatpush1.msra.mxu0 0.0
  %587 = vmatprep.subr.mxu0 0.0
  %588 = vmatpush1.msra.mxu0 0.0
  %589 = vmatprep.subr.mxu0 0.0
  %590 = vmatpush1.msra.mxu0 0.0
  %591 = vmatprep.mubr.f32.mxu0 0.0
  %592 = vmatmul.mubr.f32.gmra.mrb[0].mxu0 %v519
  %v593 = vpop.f32.mrb[0].mxu0
  %v594 = vadd.f32 0.0, %v593
  %v595 = vpop.f32.mrb[0].mxu0
  %v596 = vadd.f32 0.0, %v595
  %597 = vdwg.mxu0
  %598 = vst [vmem:[%s5] sm:$0x3f] %v594
  %599 = vst [vmem:[%s5 + $0x8] sm:$0x3f] %v596
  // Predicated region
  $region22: #{strain_to_stress_cnn.1} parent=0 // pred_check
    _
  $region23: #{strain_to_stress_cnn.1} parent=0 // pred_check_branch
    %601 = sbr.rel (0) target = $region25
  $region24: #{strain_to_stress_cnn.1} parent=0 // pred_region
    _
  $region25: #{strain_to_stress_cnn.1} parent=0 // pred_fallthru
    _
  // Predicated region
  $region26: #{strain_to_stress_cnn.1} parent=0 // pred_check
    _
  $region27: #{strain_to_stress_cnn.1} parent=0 // pred_check_branch
    %603 = sbr.rel (0) target = $region29
  $region28: #{strain_to_stress_cnn.1} parent=0 // pred_region
    _
  $region29: #{strain_to_stress_cnn.1} parent=0 // pred_fallthru
    _

</llo_original>
